<compile_context>
chip_gen: v5e
topology: v5e:2x2
jax: 0.10.0
libtpu: 0.0.40
codegen_flags: <defaults>
</compile_context>

<pallas_src>
import math
from functools import partial

import jax
import jax.numpy as jnp
from jax import lax
from jax.experimental import pallas as pl
from jax.experimental.pallas import tpu as pltpu


# ----------------------------- Pallas kernel --------------------------------


def _mhsa_kernel(x_ref, wqkv_ref, bqkv_ref, wo_ref, bo_ref, o_ref,
                 *, n_heads: int, head_dim: int, batch_block: int, seq_len: int):
    """Multi-head self-attention over a block of `batch_block` sequences.

    x_ref:    (batch_block * S, E) rows for this grid step
    wqkv_ref: (E, 3E)   pre-transposed fused QKV weight (Q part pre-scaled by 1/sqrt(E))
    bqkv_ref: (1, 3E)   fused QKV bias (Q part pre-scaled)
    wo_ref:   (E, E)    pre-transposed output-projection weight
    bo_ref:   (1, E)    output-projection bias
    o_ref:    (batch_block * S, E)
    """
    E = n_heads * head_dim
    S = seq_len
    D = head_dim

    # Fused QKV projection for all rows of the block: one (bt*S, E) x (E, 3E) matmul.
    x = x_ref[...]                                               # (bt*S, E)
    qkv = jnp.dot(x, wqkv_ref[...],
                  preferred_element_type=jnp.float32) + bqkv_ref[...]

    q_all = qkv[:, :E]                                           # already scaled by 1/sqrt(E)
    k_all = qkv[:, E:2 * E]
    v_all = qkv[:, 2 * E:]

    # Causal predicate generated once in-kernel (no HBM mask, hoisted out of head loop).
    row = lax.broadcasted_iota(jnp.int32, (S, S), 0)
    col = lax.broadcasted_iota(jnp.int32, (S, S), 1)
    causal = row >= col
    neg_inf = jnp.float32(float('-inf'))

    ctx_rows = []
    for b in range(batch_block):                                 # static, small
        r0 = b * S
        heads = []
        for h in range(n_heads):                                 # static, small
            c0 = h * D
            qh = q_all[r0:r0 + S, c0:c0 + D]                     # (S, D)
            kh = k_all[r0:r0 + S, c0:c0 + D]
            vh = v_all[r0:r0 + S, c0:c0 + D]

            # scores: contract on the last dim of both operands (no K transpose).
            s = lax.dot_general(qh, kh, (((1,), (1,)), ((), ())),
                                preferred_element_type=jnp.float32)   # (S, S)
            s = jnp.where(causal, s, neg_inf)

            # numerically-stable softmax; reciprocal on the EUP.
            s_max = jnp.max(s, axis=-1, keepdims=True)
            p = jnp.exp(s - s_max)
            p = p * pl.reciprocal(jnp.sum(p, axis=-1, keepdims=True), approx=True)

            heads.append(jnp.dot(p, vh, preferred_element_type=jnp.float32))
        ctx_rows.append(jnp.concatenate(heads, axis=-1))         # (S, E)

    # One lane/sublane-dense context slab, one output-projection matmul, one store.
    ctx = jnp.concatenate(ctx_rows, axis=0)                      # (bt*S, E)
    out = jnp.dot(ctx, wo_ref[...],
                  preferred_element_type=jnp.float32) + bo_ref[...]
    o_ref[...] = out.astype(o_ref.dtype)
    # TODO(synk): dropout omitted (identity at inference / p=0).


# ------------------------------ host wrapper --------------------------------


def _pick_batch_block(B: int, S: int, target_rows: int = 128) -> int:
    """Largest divisor of B such that batch_block * S <= ~target_rows (>=1)."""
    max_bt = max(1, target_rows // max(S, 1))
    bt = 1
    for c in range(1, min(B, max_bt) + 1):
        if B % c == 0:
            bt = c
    return bt


def mhsa_forward(x, params, *, n_heads: int, head_dim: int, batch_block=None):
    """x: (B, S, E) float32, params: PyTorch-layout weights. Returns (B, S, E)."""
    B, S, E = x.shape
    assert E == n_heads * head_dim

    if batch_block is None:
        batch_block = _pick_batch_block(B, S)
    assert B % batch_block == 0
    rows_per_block = batch_block * S

    # Host-side (one-time) weight prep: fuse QKV, pre-transpose, fold 1/sqrt(E) into Q.
    scale = 1.0 / math.sqrt(float(E))
    wqkv_t = jnp.concatenate(
        [params["wq"] * scale, params["wk"], params["wv"]], axis=0).T      # (E, 3E)
    bqkv = jnp.concatenate(
        [params["bq"] * scale, params["bk"], params["bv"]], axis=-1)       # (1, 3E)
    wo_t = params["wo"].T                                                  # (E, E)
    bo = params["bo"]                                                      # (1, E)

    x2d = x.reshape(B * S, E)

    kernel = partial(_mhsa_kernel, n_heads=n_heads, head_dim=head_dim,
                     batch_block=batch_block, seq_len=S)

    full = lambda shape: pl.BlockSpec(shape, lambda i: (0, 0))

    out2d = pl.pallas_call(
        kernel,
        out_shape=jax.ShapeDtypeStruct((B * S, E), x.dtype),
        grid_spec=pltpu.PrefetchScalarGridSpec(
            num_scalar_prefetch=0,
            grid=(B // batch_block,),
            in_specs=[
                pl.BlockSpec((rows_per_block, E), lambda i: (i, 0)),   # x rows
                full((E, 3 * E)),                                      # fused Wqkv^T
                full((1, 3 * E)),                                      # fused bqkv
                full((E, E)),                                          # Wo^T
                full((1, E)),                                          # bo
            ],
            out_specs=pl.BlockSpec((rows_per_block, E), lambda i: (i, 0)),
        ),
        compiler_params=pltpu.CompilerParams(
            dimension_semantics=("parallel",)),
    )(x2d, wqkv_t, bqkv, wo_t, bo)

    return out2d.reshape(B, S, E)


# --------------------------- pure-JAX reference ------------------------------


def mhsa_reference(x, params, *, n_heads: int, head_dim: int):
    B, S, E = x.shape
    q = x @ params["wq"].T + params["bq"]
    k = x @ params["wk"].T + params["bk"]
    v = x @ params["wv"].T + params["bv"]
    q = q.reshape(B, S, n_heads, head_dim)
    k = k.reshape(B, S, n_heads, head_dim)
    v = v.reshape(B, S, n_heads, head_dim)
    scores = jnp.einsum('bqhd,bkhd->bhqk', q, k) / math.sqrt(E)
    mask = jnp.tril(jnp.ones((S, S), dtype=jnp.float32))
    scores = jnp.where(mask == 0.0, float('-inf'), scores)
    p = jax.nn.softmax(scores, axis=-1)
    out = jnp.einsum('bhql,blhd->bqhd', p, v).reshape(B, S, E)
    return out @ params["wo"].T + params["bo"]


# ----------------------------------- main ------------------------------------


if __name__ == "__main__":
    # Small shapes consistent with the module's forward: (batch, seq, embedding)
    B, S = 2, 8
    N_HEADS, HEAD_DIM = 2, 16
    E = N_HEADS * HEAD_DIM  # 32

    key = jax.random.PRNGKey(0)
    keys = jax.random.split(key, 9)
    bound = 1.0 / math.sqrt(E)  # nn.Linear default init range

    params = {
        "wq": jax.random.uniform(keys[0], (E, E), jnp.float32, -bound, bound),
        "wk": jax.random.uniform(keys[1], (E, E), jnp.float32, -bound, bound),
        "wv": jax.random.uniform(keys[2], (E, E), jnp.float32, -bound, bound),
        "wo": jax.random.uniform(keys[3], (E, E), jnp.float32, -bound, bound),
        "bq": jax.random.uniform(keys[4], (1, E), jnp.float32, -bound, bound),
        "bk": jax.random.uniform(keys[5], (1, E), jnp.float32, -bound, bound),
        "bv": jax.random.uniform(keys[6], (1, E), jnp.float32, -bound, bound),
        "bo": jax.random.uniform(keys[7], (1, E), jnp.float32, -bound, bound),
    }
    x = jax.random.normal(keys[8], (B, S, E), jnp.float32)

    out = mhsa_forward(x, params, n_heads=N_HEADS, head_dim=HEAD_DIM)
    out = jax.block_until_ready(out)

    ref = mhsa_reference(x, params, n_heads=N_HEADS, head_dim=HEAD_DIM)
    assert out.shape == (B, S, E)
    # approx=True reciprocal in the softmax gives ~1e-3-level relative deviations.
    assert jnp.allclose(out, ref, atol=2e-3, rtol=2e-3), "mismatch vs reference"

    print("KERNEL_OK")
</pallas_src>

<mosaic_0001>
module attributes {stable_mosaic.version = 11 : i64} {
  func.func @_mhsa_kernel(%arg0: i32, %arg1: memref<16x32xf32, #tpu.memory_space<vmem>>, %arg2: memref<32x96xf32, #tpu.memory_space<vmem>>, %arg3: memref<1x96xf32, #tpu.memory_space<vmem>>, %arg4: memref<32x32xf32, #tpu.memory_space<vmem>>, %arg5: memref<1x32xf32, #tpu.memory_space<vmem>>, %arg6: memref<16x32xf32, #tpu.memory_space<vmem>>) attributes {dimension_semantics = [#tpu.dimension_semantics<parallel>], iteration_bounds = array<i64: 1>, scalar_prefetch = 0 : i64, scratch_operands = 0 : i64, tpu.core_type = #tpu.core_type<tc>, window_params = [{transform_indices = @transform_0, window_bounds = array<i64: 16, 32>}, {pipeline_mode = #tpu.pipeline_mode<synchronous>, transform_indices = @transform_1, window_bounds = array<i64: 32, 96>}, {pipeline_mode = #tpu.pipeline_mode<synchronous>, transform_indices = @transform_2, window_bounds = array<i64: 1, 96>}, {pipeline_mode = #tpu.pipeline_mode<synchronous>, transform_indices = @transform_3, window_bounds = array<i64: 32, 32>}, {pipeline_mode = #tpu.pipeline_mode<synchronous>, transform_indices = @transform_4, window_bounds = array<i64: 1, 32>}, {transform_indices = @transform_5, window_bounds = array<i64: 16, 32>}]} {
    %c0 = arith.constant 0 : index
    %c0_0 = arith.constant 0 : index
    %0 = vector.load %arg1[%c0, %c0_0] : memref<16x32xf32, #tpu.memory_space<vmem>>, vector<16x32xf32>
    %c0_1 = arith.constant 0 : index
    %c0_2 = arith.constant 0 : index
    %1 = vector.load %arg2[%c0_1, %c0_2] : memref<32x96xf32, #tpu.memory_space<vmem>>, vector<32x96xf32>
    %cst = arith.constant dense<0.000000e+00> : vector<16x96xf32>
    %2 = tpu.matmul %0, %1, %cst {dimension_numbers = #tpu.dot_dimension_numbers<[1], [0], [0], [1], [0, 0, 1, 1], [], []>} : vector<16x32xf32>, vector<32x96xf32>, vector<16x96xf32> -> vector<16x96xf32>
    %c0_3 = arith.constant 0 : index
    %c0_4 = arith.constant 0 : index
    %3 = vector.load %arg3[%c0_3, %c0_4] : memref<1x96xf32, #tpu.memory_space<vmem>>, vector<1x96xf32>
    %4 = vector.broadcast %3 : vector<1x96xf32> to vector<16x96xf32>
    %5 = arith.addf %2, %4 : vector<16x96xf32>
    %6 = vector.extract_strided_slice %5 {offsets = [0, 0], sizes = [16, 32], strides = [1, 1]} : vector<16x96xf32> to vector<16x32xf32>
    %7 = vector.extract_strided_slice %5 {offsets = [0, 32], sizes = [16, 32], strides = [1, 1]} : vector<16x96xf32> to vector<16x32xf32>
    %8 = vector.extract_strided_slice %5 {offsets = [0, 64], sizes = [16, 32], strides = [1, 1]} : vector<16x96xf32> to vector<16x32xf32>
    %9 = tpu.iota {dimensions = array<i32: 0>} : vector<8x8xi32>
    %10 = tpu.iota {dimensions = array<i32: 1>} : vector<8x8xi32>
    %11 = arith.cmpi sge, %9, %10 : vector<8x8xi32>
    %12 = vector.extract_strided_slice %6 {offsets = [0, 0], sizes = [8, 16], strides = [1, 1]} : vector<16x32xf32> to vector<8x16xf32>
    %13 = vector.extract_strided_slice %7 {offsets = [0, 0], sizes = [8, 16], strides = [1, 1]} : vector<16x32xf32> to vector<8x16xf32>
    %14 = vector.extract_strided_slice %8 {offsets = [0, 0], sizes = [8, 16], strides = [1, 1]} : vector<16x32xf32> to vector<8x16xf32>
    %cst_5 = arith.constant dense<0.000000e+00> : vector<8x8xf32>
    %15 = tpu.matmul %12, %13, %cst_5 {dimension_numbers = #tpu.dot_dimension_numbers<[1], [1], [0], [0], [0, 0, 1, 0], [], []>} : vector<8x16xf32>, vector<8x16xf32>, vector<8x8xf32> -> vector<8x8xf32>
    %cst_6 = arith.constant 0xFF800000 : f32
    %16 = vector.broadcast %cst_6 : f32 to vector<8x8xf32>
    %17 = arith.select %11, %15, %16 : vector<8x8xi1>, vector<8x8xf32>
    %cst_7 = arith.constant dense<0xFF800000> : vector<8xf32>
    %18 = vector.multi_reduction <maximumf>, %17, %cst_7 [1] : vector<8x8xf32> to vector<8xf32>
    %19 = vector.shape_cast %18 : vector<8xf32> to vector<8x1xf32>
    %20 = vector.broadcast %19 : vector<8x1xf32> to vector<8x8xf32>
    %21 = arith.subf %17, %20 : vector<8x8xf32>
    %22 = math.exp %21 : vector<8x8xf32>
    %cst_8 = arith.constant dense<0.000000e+00> : vector<8xf32>
    %23 = vector.multi_reduction <add>, %22, %cst_8 [1] : vector<8x8xf32> to vector<8xf32>
    %24 = vector.shape_cast %23 : vector<8xf32> to vector<8x1xf32>
    %25 = tpu.reciprocal %24 {approx = true} : vector<8x1xf32> -> vector<8x1xf32>
    %26 = vector.broadcast %25 : vector<8x1xf32> to vector<8x8xf32>
    %27 = arith.mulf %22, %26 : vector<8x8xf32>
    %cst_9 = arith.constant dense<0.000000e+00> : vector<8x16xf32>
    %28 = tpu.matmul %27, %14, %cst_9 {dimension_numbers = #tpu.dot_dimension_numbers<[1], [0], [0], [1], [0, 0, 1, 1], [], []>} : vector<8x8xf32>, vector<8x16xf32>, vector<8x16xf32> -> vector<8x16xf32>
    %29 = vector.extract_strided_slice %6 {offsets = [0, 16], sizes = [8, 16], strides = [1, 1]} : vector<16x32xf32> to vector<8x16xf32>
    %30 = vector.extract_strided_slice %7 {offsets = [0, 16], sizes = [8, 16], strides = [1, 1]} : vector<16x32xf32> to vector<8x16xf32>
    %31 = vector.extract_strided_slice %8 {offsets = [0, 16], sizes = [8, 16], strides = [1, 1]} : vector<16x32xf32> to vector<8x16xf32>
    %cst_10 = arith.constant dense<0.000000e+00> : vector<8x8xf32>
    %32 = tpu.matmul %29, %30, %cst_10 {dimension_numbers = #tpu.dot_dimension_numbers<[1], [1], [0], [0], [0, 0, 1, 0], [], []>} : vector<8x16xf32>, vector<8x16xf32>, vector<8x8xf32> -> vector<8x8xf32>
    %cst_11 = arith.constant 0xFF800000 : f32
    %33 = vector.broadcast %cst_11 : f32 to vector<8x8xf32>
    %34 = arith.select %11, %32, %33 : vector<8x8xi1>, vector<8x8xf32>
    %cst_12 = arith.constant dense<0xFF800000> : vector<8xf32>
    %35 = vector.multi_reduction <maximumf>, %34, %cst_12 [1] : vector<8x8xf32> to vector<8xf32>
    %36 = vector.shape_cast %35 : vector<8xf32> to vector<8x1xf32>
    %37 = vector.broadcast %36 : vector<8x1xf32> to vector<8x8xf32>
    %38 = arith.subf %34, %37 : vector<8x8xf32>
    %39 = math.exp %38 : vector<8x8xf32>
    %cst_13 = arith.constant dense<0.000000e+00> : vector<8xf32>
    %40 = vector.multi_reduction <add>, %39, %cst_13 [1] : vector<8x8xf32> to vector<8xf32>
    %41 = vector.shape_cast %40 : vector<8xf32> to vector<8x1xf32>
    %42 = tpu.reciprocal %41 {approx = true} : vector<8x1xf32> -> vector<8x1xf32>
    %43 = vector.broadcast %42 : vector<8x1xf32> to vector<8x8xf32>
    %44 = arith.mulf %39, %43 : vector<8x8xf32>
    %cst_14 = arith.constant dense<0.000000e+00> : vector<8x16xf32>
    %45 = tpu.matmul %44, %31, %cst_14 {dimension_numbers = #tpu.dot_dimension_numbers<[1], [0], [0], [1], [0, 0, 1, 1], [], []>} : vector<8x8xf32>, vector<8x16xf32>, vector<8x16xf32> -> vector<8x16xf32>
    %46 = tpu.concatenate %28, %45 in 1 : vector<8x16xf32>, vector<8x16xf32> -> vector<8x32xf32>
    %47 = vector.extract_strided_slice %6 {offsets = [8, 0], sizes = [8, 16], strides = [1, 1]} : vector<16x32xf32> to vector<8x16xf32>
    %48 = vector.extract_strided_slice %7 {offsets = [8, 0], sizes = [8, 16], strides = [1, 1]} : vector<16x32xf32> to vector<8x16xf32>
    %49 = vector.extract_strided_slice %8 {offsets = [8, 0], sizes = [8, 16], strides = [1, 1]} : vector<16x32xf32> to vector<8x16xf32>
    %cst_15 = arith.constant dense<0.000000e+00> : vector<8x8xf32>
    %50 = tpu.matmul %47, %48, %cst_15 {dimension_numbers = #tpu.dot_dimension_numbers<[1], [1], [0], [0], [0, 0, 1, 0], [], []>} : vector<8x16xf32>, vector<8x16xf32>, vector<8x8xf32> -> vector<8x8xf32>
    %cst_16 = arith.constant 0xFF800000 : f32
    %51 = vector.broadcast %cst_16 : f32 to vector<8x8xf32>
    %52 = arith.select %11, %50, %51 : vector<8x8xi1>, vector<8x8xf32>
    %cst_17 = arith.constant dense<0xFF800000> : vector<8xf32>
    %53 = vector.multi_reduction <maximumf>, %52, %cst_17 [1] : vector<8x8xf32> to vector<8xf32>
    %54 = vector.shape_cast %53 : vector<8xf32> to vector<8x1xf32>
    %55 = vector.broadcast %54 : vector<8x1xf32> to vector<8x8xf32>
    %56 = arith.subf %52, %55 : vector<8x8xf32>
    %57 = math.exp %56 : vector<8x8xf32>
    %cst_18 = arith.constant dense<0.000000e+00> : vector<8xf32>
    %58 = vector.multi_reduction <add>, %57, %cst_18 [1] : vector<8x8xf32> to vector<8xf32>
    %59 = vector.shape_cast %58 : vector<8xf32> to vector<8x1xf32>
    %60 = tpu.reciprocal %59 {approx = true} : vector<8x1xf32> -> vector<8x1xf32>
    %61 = vector.broadcast %60 : vector<8x1xf32> to vector<8x8xf32>
    %62 = arith.mulf %57, %61 : vector<8x8xf32>
    %cst_19 = arith.constant dense<0.000000e+00> : vector<8x16xf32>
    %63 = tpu.matmul %62, %49, %cst_19 {dimension_numbers = #tpu.dot_dimension_numbers<[1], [0], [0], [1], [0, 0, 1, 1], [], []>} : vector<8x8xf32>, vector<8x16xf32>, vector<8x16xf32> -> vector<8x16xf32>
    %64 = vector.extract_strided_slice %6 {offsets = [8, 16], sizes = [8, 16], strides = [1, 1]} : vector<16x32xf32> to vector<8x16xf32>
    %65 = vector.extract_strided_slice %7 {offsets = [8, 16], sizes = [8, 16], strides = [1, 1]} : vector<16x32xf32> to vector<8x16xf32>
    %66 = vector.extract_strided_slice %8 {offsets = [8, 16], sizes = [8, 16], strides = [1, 1]} : vector<16x32xf32> to vector<8x16xf32>
    %cst_20 = arith.constant dense<0.000000e+00> : vector<8x8xf32>
    %67 = tpu.matmul %64, %65, %cst_20 {dimension_numbers = #tpu.dot_dimension_numbers<[1], [1], [0], [0], [0, 0, 1, 0], [], []>} : vector<8x16xf32>, vector<8x16xf32>, vector<8x8xf32> -> vector<8x8xf32>
    %cst_21 = arith.constant 0xFF800000 : f32
    %68 = vector.broadcast %cst_21 : f32 to vector<8x8xf32>
    %69 = arith.select %11, %67, %68 : vector<8x8xi1>, vector<8x8xf32>
    %cst_22 = arith.constant dense<0xFF800000> : vector<8xf32>
    %70 = vector.multi_reduction <maximumf>, %69, %cst_22 [1] : vector<8x8xf32> to vector<8xf32>
    %71 = vector.shape_cast %70 : vector<8xf32> to vector<8x1xf32>
    %72 = vector.broadcast %71 : vector<8x1xf32> to vector<8x8xf32>
    %73 = arith.subf %69, %72 : vector<8x8xf32>
    %74 = math.exp %73 : vector<8x8xf32>
    %cst_23 = arith.constant dense<0.000000e+00> : vector<8xf32>
    %75 = vector.multi_reduction <add>, %74, %cst_23 [1] : vector<8x8xf32> to vector<8xf32>
    %76 = vector.shape_cast %75 : vector<8xf32> to vector<8x1xf32>
    %77 = tpu.reciprocal %76 {approx = true} : vector<8x1xf32> -> vector<8x1xf32>
    %78 = vector.broadcast %77 : vector<8x1xf32> to vector<8x8xf32>
    %79 = arith.mulf %74, %78 : vector<8x8xf32>
    %cst_24 = arith.constant dense<0.000000e+00> : vector<8x16xf32>
    %80 = tpu.matmul %79, %66, %cst_24 {dimension_numbers = #tpu.dot_dimension_numbers<[1], [0], [0], [1], [0, 0, 1, 1], [], []>} : vector<8x8xf32>, vector<8x16xf32>, vector<8x16xf32> -> vector<8x16xf32>
    %81 = tpu.concatenate %63, %80 in 1 : vector<8x16xf32>, vector<8x16xf32> -> vector<8x32xf32>
    %82 = tpu.concatenate %46, %81 in 0 : vector<8x32xf32>, vector<8x32xf32> -> vector<16x32xf32>
    %c0_25 = arith.constant 0 : index
    %c0_26 = arith.constant 0 : index
    %83 = vector.load %arg4[%c0_25, %c0_26] : memref<32x32xf32, #tpu.memory_space<vmem>>, vector<32x32xf32>
    %cst_27 = arith.constant dense<0.000000e+00> : vector<16x32xf32>
    %84 = tpu.matmul %82, %83, %cst_27 {dimension_numbers = #tpu.dot_dimension_numbers<[1], [0], [0], [1], [0, 0, 1, 1], [], []>} : vector<16x32xf32>, vector<32x32xf32>, vector<16x32xf32> -> vector<16x32xf32>
    %c0_28 = arith.constant 0 : index
    %c0_29 = arith.constant 0 : index
    %85 = vector.load %arg5[%c0_28, %c0_29] : memref<1x32xf32, #tpu.memory_space<vmem>>, vector<1x32xf32>
    %86 = vector.broadcast %85 : vector<1x32xf32> to vector<16x32xf32>
    %87 = arith.addf %84, %86 : vector<16x32xf32>
    %c0_30 = arith.constant 0 : index
    %c0_31 = arith.constant 0 : index
    %88 = vector.load %arg6[%c0_30, %c0_31] : memref<16x32xf32, #tpu.memory_space<vmem>>, vector<16x32xf32>
    tpu.vector_store %arg6[%c0_30, %c0_31], %87 {strides = array<i32>} : memref<16x32xf32, #tpu.memory_space<vmem>>, vector<16x32xf32>,
    return
  }
  func.func @transform_0(%arg0: i32) -> (i32, i32) {
    %c0_i32 = arith.constant 0 : i32
    %c0_i32_0 = arith.constant 0 : i32
    return %arg0, %c0_i32 : i32, i32
  }
  func.func @transform_1(%arg0: i32) -> (i32, i32) {
    %c0_i32 = arith.constant 0 : i32
    %c0_i32_0 = arith.constant 0 : i32
    %c0_i32_1 = arith.constant 0 : i32
    return %c0_i32, %c0_i32_0 : i32, i32
  }
  func.func @transform_2(%arg0: i32) -> (i32, i32) {
    %c0_i32 = arith.constant 0 : i32
    %c0_i32_0 = arith.constant 0 : i32
    %c0_i32_1 = arith.constant 0 : i32
    return %c0_i32, %c0_i32_0 : i32, i32
  }
  func.func @transform_3(%arg0: i32) -> (i32, i32) {
    %c0_i32 = arith.constant 0 : i32
    %c0_i32_0 = arith.constant 0 : i32
    %c0_i32_1 = arith.constant 0 : i32
    return %c0_i32, %c0_i32_0 : i32, i32
  }
  func.func @transform_4(%arg0: i32) -> (i32, i32) {
    %c0_i32 = arith.constant 0 : i32
    %c0_i32_0 = arith.constant 0 : i32
    %c0_i32_1 = arith.constant 0 : i32
    return %c0_i32, %c0_i32_0 : i32, i32
  }
  func.func @transform_5(%arg0: i32) -> (i32, i32) {
    %c0_i32 = arith.constant 0 : i32
    %c0_i32_0 = arith.constant 0 : i32
    return %arg0, %c0_i32 : i32, i32
  }
}

</mosaic_0001>

<llo_original>
// kernel: tpu_custom_call.1
$region0: #{tpu_custom_call.1}
  #allocation0 [shape = 'u32[]', space=smem, size = 0x4, offset = 0x4, fixed_abs, tag = 'smem constant byte address 0x4 - core index']
  #allocation1 [shape = 'u32[72,128]{1,0:T(1,128)}', space=vmem, size = 0x9000, scoped, tag = 'internal scratch']
  %s0 = inlined_call_operand.hbm [shape: f32[16,32], index: 0, kind: input, shape index: {}]
  %s1 = inlined_call_operand.hbm [shape: f32[32,96], index: 1, kind: input, shape index: {}]
  %s2 = inlined_call_operand.vmem [shape: f32[1,96], index: 2, kind: input, shape index: {}]
  %s3 = inlined_call_operand.hbm [shape: f32[32,32], index: 3, kind: input, shape index: {}]
  %s4 = inlined_call_operand.vmem [shape: f32[1,32], index: 4, kind: input, shape index: {}]
  %s5 = inlined_call_operand.hbm [shape: f32[16,32], index: 5, kind: output, shape index: {}]
  %s6 = sld [smem:[#allocation0]]
  $region42: #{tpu_custom_call.1} parent=0
    _
  %s8 = ssub.s32 1, %s6
  %s9 = scalar_select 0, %s8, %s6
  $region1: #{tpu_custom_call.1} parent=0
    #allocation2 [shape = 'u8[8192]{0}', space=vmem, size = 0x2000, scoped, tag = 'input window, operand 0, single buffered']
    #allocation3 [shape = 's32[1]{0}', space=sflag, size = 0x4, scoped, tag = 'scoped memory for tpu_custom_call.1']
    #allocation4 [shape = 's32[1]{0}', space=sflag, size = 0x4, scoped, tag = 'scoped memory for tpu_custom_call.1']
    #allocation5 [shape = 'u8[16384]{0}', space=vmem, size = 0x4000, scoped, tag = 'input window, operand 1, single buffered']
    #allocation6 [shape = 's32[1]{0}', space=sflag, size = 0x4, scoped, tag = 'scoped memory for tpu_custom_call.1']
    #allocation7 [shape = 'u8[16384]{0}', space=vmem, size = 0x4000, scoped, tag = 'input window, operand 3, single buffered']
    #allocation8 [shape = 'u8[8192]{0}', space=vmem, size = 0x2000, scoped, tag = 'output window, operand 0, single buffered']
    %10 = vsyncpa [#allocation3], 0
    %11 = vsyncpa [#allocation6], 0
    %12 = vsyncpa [#allocation4], 0
    // Predicated region
    $region2: #{tpu_custom_call.1} parent=1 // pred_check
      _
    $region3: #{tpu_custom_call.1} parent=1 // pred_check_branch
      %14 = sbr.rel (0) target = $region5
    $region4: #{tpu_custom_call.1} parent=1 // pred_region
      %16 = vsyncadd [#allocation3], 0
      %s17 = sshll.u32 %s0, 4
      %s18 = int_to_ptr.hbm [resolvable:$true] %s17
      %s19 = sshll.u32 [#allocation2], 4
      %s20 = int_to_ptr.vmem [resolvable:$true] %s19
      %25 = dma.hbm_to_vmem [thread:$0]  %s18, 256, %s20, [#allocation3], 128, 128, 8
    $region5: #{tpu_custom_call.1} parent=1 // pred_fallthru
      _
    // Predicated region
    $region6: #{tpu_custom_call.1} parent=1 // pred_check
      _
    $region7: #{tpu_custom_call.1} parent=1 // pred_check_branch
      %27 = sbr.rel (0) target = $region9
    $region8: #{tpu_custom_call.1} parent=1 // pred_region
      %29 = vsyncadd [#allocation6], 0
      %s30 = sshll.u32 %s1, 4
      %s31 = int_to_ptr.hbm [resolvable:$true] %s30
      %s32 = sshll.u32 [#allocation5], 4
      %s33 = int_to_ptr.vmem [resolvable:$true] %s32
      %38 = dma.hbm_to_vmem [thread:$0]  %s31, 512, %s33, [#allocation6], 128, 128, 8
    $region9: #{tpu_custom_call.1} parent=1 // pred_fallthru
      _
    // Predicated region
    $region10: #{tpu_custom_call.1} parent=1 // pred_check
      _
    $region11: #{tpu_custom_call.1} parent=1 // pred_check_branch
      %40 = sbr.rel (0) target = $region13
    $region12: #{tpu_custom_call.1} parent=1 // pred_region
      _
    $region13: #{tpu_custom_call.1} parent=1 // pred_fallthru
      _
    // Predicated region
    $region14: #{tpu_custom_call.1} parent=1 // pred_check
      _
    $region15: #{tpu_custom_call.1} parent=1 // pred_check_branch
      %42 = sbr.rel (0) target = $region17
    $region16: #{tpu_custom_call.1} parent=1 // pred_region
      %44 = vsyncadd [#allocation6], 0
      %s45 = sshll.u32 %s3, 4
      %s46 = int_to_ptr.hbm [resolvable:$true] %s45
      %s47 = sshll.u32 [#allocation7], 4
      %s48 = int_to_ptr.vmem [resolvable:$true] %s47
      %53 = dma.hbm_to_vmem [thread:$0]  %s46, 512, %s48, [#allocation6], 128, 128, 8
    $region17: #{tpu_custom_call.1} parent=1 // pred_fallthru
      _
    // Predicated region
    $region18: #{tpu_custom_call.1} parent=1 // pred_check
      _
    $region19: #{tpu_custom_call.1} parent=1 // pred_check_branch
      %55 = sbr.rel (0) target = $region21
    $region20: #{tpu_custom_call.1} parent=1 // pred_region
      _
    $region21: #{tpu_custom_call.1} parent=1 // pred_fallthru
      _
    // Predicated region
    $region22: #{tpu_custom_call.1} parent=1 // pred_check
      _
    $region23: #{tpu_custom_call.1} parent=1 // pred_check_branch
      %57 = sbr.rel (0) target = $region25
    $region24: #{tpu_custom_call.1} parent=1 // pred_region
      %59 = dma.done [#allocation3], 256
    $region25: #{tpu_custom_call.1} parent=1 // pred_fallthru
      _
    // Predicated region
    $region26: #{tpu_custom_call.1} parent=1 // pred_check
      _
    $region27: #{tpu_custom_call.1} parent=1 // pred_check_branch
      %61 = sbr.rel (0) target = $region29
    $region28: #{tpu_custom_call.1} parent=1 // pred_region
      %63 = dma.done [#allocation6], 512
    $region29: #{tpu_custom_call.1} parent=1 // pred_fallthru
      _
    // Predicated region
    $region30: #{tpu_custom_call.1} parent=1 // pred_check
      _
    $region31: #{tpu_custom_call.1} parent=1 // pred_check_branch
      %65 = sbr.rel (0) target = $region33
    $region32: #{tpu_custom_call.1} parent=1 // pred_region
      %67 = dma.done [#allocation6], 512
    $region33: #{tpu_custom_call.1} parent=1 // pred_fallthru
      _
    %v68 = vld [vmem:[#allocation2] sm:$0xff]
    %v69 = vld [vmem:[#allocation2 + $0x8] sm:$0xff]
    %v70 = vld [vmem:[#allocation5] sm:$0xff]
    %v71 = vld [vmem:[#allocation5 + $0x8] sm:$0xff]
    %v72 = vld [vmem:[#allocation5 + $0x10] sm:$0xff]
    %v73 = vld [vmem:[#allocation5 + $0x18] sm:$0xff]
    %v74 = vld [vmem:[%s2] sm:$0x1]
    %v76 = vperm.slane %v74, 0
    %vm78 = vcmask 261120
    %v80 = vsel %vm78, %v68, 0
    %v83 = vsel %vm78, %v69, 0
    %85 = vmatpush.msra.mxu0 0.0
    %86 = vmatpush.msra.mxu0 0.0
    %87 = vmatpush.msra.mxu0 0.0
    %88 = vmatpush.msra.mxu0 0.0
    %89 = vmatpush.msra.mxu0 0.0
    %90 = vmatpush.msra.mxu0 0.0
    %91 = vmatpush.msra.mxu0 0.0
    %92 = vmatpush.msra.mxu0 0.0
    %93 = vmatpush.msra.mxu0 0.0
    %94 = vmatpush.msra.mxu0 0.0
    %95 = vmatpush.msra.mxu0 0.0
    %96 = vmatpush.msra.mxu0 0.0
    %97 = vmatpush.msra.mxu0 %v73
    %98 = vmatpush.msra.mxu0 %v72
    %99 = vmatpush.msra.mxu0 %v71
    %100 = vmatpush.msra.mxu0 %v70
    %101 = vmatmul.f32.gmra.mxu0 %v80
    %v102 = vpop.f32.mrf.mxu0
    %v103 = vadd.f32 %v76, %v102
    %104 = vmatmul.f32.gmra.mxu0 %v83
    %v105 = vpop.f32.mrf.mxu0
    %v106 = vadd.f32 %v76, %v105
    %107 = vdwg.mxu0
    %v108 = vlaneseq
    %v109 = vshrl.u32 %v108, 7
    %v110 = vlaneseq
    %v111 = vand.u32 %v110, 127
    %vm112 = vcmp.ge.s32.totalorder %v109, %v111
    %114 = vrot.lane.b32.xlu0 %v103, 96
    %v115 = vpop.permute.xlu0 %114
    %vm116 = vcmask 130048
    %v117 = vsel %vm116, %v103, 0
    %v119 = vsel %vm116, %v115, 0
    %121 = vmatpush.xpose.msra.mxu0 0.0
    %122 = vmatpush.xpose.msra.mxu0 0.0
    %123 = vmatpush.xpose.msra.mxu0 0.0
    %124 = vmatpush.xpose.msra.mxu0 0.0
    %125 = vmatpush.xpose.msra.mxu0 0.0
    %126 = vmatpush.xpose.msra.mxu0 0.0
    %127 = vmatpush.xpose.msra.mxu0 0.0
    %128 = vmatpush.xpose.msra.mxu0 0.0
    %129 = vmatpush.xpose.msra.mxu0 0.0
    %130 = vmatpush.xpose.msra.mxu0 0.0
    %131 = vmatpush.xpose.msra.mxu0 0.0
    %132 = vmatpush.xpose.msra.mxu0 0.0
    %133 = vmatpush.xpose.msra.mxu0 0.0
    %134 = vmatpush.xpose.msra.mxu0 0.0
    %135 = vmatpush.xpose.msra.mxu0 0.0
    %136 = vmatpush.xpose.msra.mxu0 %v119
    %137 = vmatmul.f32.gmra.mxu0 %v117
    %v138 = vpop.f32.mrf.mxu0
    %v139 = vadd.f32 0.0, %v138
    %140 = vdwg.mxu0
    %v141 = vsel %vm112, %v139, -inf
    %vm142 = vcmask 64512
    %v143 = vsel %vm142, %v141, -inf
    %144 = vmax.xlane.f32.xlu0 %v143
    %v145 = vpop.xlane.xlu0 %144
    %v146 = vsub.f32 %v141, %v145
    %v147 = vmul.f32 %v146, 1.442695
    %v148 = vpow.pop %v147
    %v149 = vsel %vm142, %v148, 0.0
    %150 = vadd.xlane.f32.xlu0 %v149
    %v151 = vpop.xlane.xlu0 %150
    %v152 = vrcp.pop %v151
    %v153 = vmul.f32 %v148, %v152
    %154 = vrot.lane.b32.xlu0 %v103, 64
    %v155 = vpop.permute.xlu0 %154
    %v158 = vsel %vm142, %v153, 0
    %160 = vmatpush.msra.mxu0 0.0
    %161 = vmatpush.msra.mxu0 0.0
    %162 = vmatpush.msra.mxu0 0.0
    %163 = vmatpush.msra.mxu0 0.0
    %164 = vmatpush.msra.mxu0 0.0
    %165 = vmatpush.msra.mxu0 0.0
    %166 = vmatpush.msra.mxu0 0.0
    %167 = vmatpush.msra.mxu0 0.0
    %168 = vmatpush.msra.mxu0 0.0
    %169 = vmatpush.msra.mxu0 0.0
    %170 = vmatpush.msra.mxu0 0.0
    %171 = vmatpush.msra.mxu0 0.0
    %172 = vmatpush.msra.mxu0 0.0
    %173 = vmatpush.msra.mxu0 0.0
    %174 = vmatpush.msra.mxu0 0.0
    %175 = vmatpush.msra.mxu0 %v155
    %176 = vmatmul.f32.gmra.mxu0 %v158
    %v177 = vpop.f32.mrf.mxu0
    %v178 = vadd.f32 0.0, %v177
    %179 = vdwg.mxu0
    %180 = vrot.lane.b32.xlu0 %v103, 112
    %v181 = vpop.permute.xlu0 %180
    %182 = vrot.lane.b32.xlu0 %v103, 80
    %v183 = vpop.permute.xlu0 %182
    %v184 = vsel %vm116, %v181, 0
    %v186 = vsel %vm116, %v183, 0
    %188 = vmatpush.xpose.msra.mxu0 0.0
    %189 = vmatpush.xpose.msra.mxu0 0.0
    %190 = vmatpush.xpose.msra.mxu0 0.0
    %191 = vmatpush.xpose.msra.mxu0 0.0
    %192 = vmatpush.xpose.msra.mxu0 0.0
    %193 = vmatpush.xpose.msra.mxu0 0.0
    %194 = vmatpush.xpose.msra.mxu0 0.0
    %195 = vmatpush.xpose.msra.mxu0 0.0
    %196 = vmatpush.xpose.msra.mxu0 0.0
    %197 = vmatpush.xpose.msra.mxu0 0.0
    %198 = vmatpush.xpose.msra.mxu0 0.0
    %199 = vmatpush.xpose.msra.mxu0 0.0
    %200 = vmatpush.xpose.msra.mxu0 0.0
    %201 = vmatpush.xpose.msra.mxu0 0.0
    %202 = vmatpush.xpose.msra.mxu0 0.0
    %203 = vmatpush.xpose.msra.mxu0 %v186
    %204 = vmatmul.f32.gmra.mxu0 %v184
    %v205 = vpop.f32.mrf.mxu0
    %v206 = vadd.f32 0.0, %v205
    %207 = vdwg.mxu0
    %v208 = vsel %vm112, %v206, -inf
    %v209 = vsel %vm142, %v208, -inf
    %210 = vmax.xlane.f32.xlu0 %v209
    %v211 = vpop.xlane.xlu0 %210
    %v212 = vsub.f32 %v208, %v211
    %v213 = vmul.f32 %v212, 1.442695
    %v214 = vpow.pop %v213
    %v215 = vsel %vm142, %v214, 0.0
    %216 = vadd.xlane.f32.xlu0 %v215
    %v217 = vpop.xlane.xlu0 %216
    %v218 = vrcp.pop %v217
    %v219 = vmul.f32 %v214, %v218
    %220 = vrot.lane.b32.xlu0 %v103, 48
    %v221 = vpop.permute.xlu0 %220
    %v224 = vsel %vm142, %v219, 0
    %226 = vmatpush.msra.mxu0 0.0
    %227 = vmatpush.msra.mxu0 0.0
    %228 = vmatpush.msra.mxu0 0.0
    %229 = vmatpush.msra.mxu0 0.0
    %230 = vmatpush.msra.mxu0 0.0
    %231 = vmatpush.msra.mxu0 0.0
    %232 = vmatpush.msra.mxu0 0.0
    %233 = vmatpush.msra.mxu0 0.0
    %234 = vmatpush.msra.mxu0 0.0
    %235 = vmatpush.msra.mxu0 0.0
    %236 = vmatpush.msra.mxu0 0.0
    %237 = vmatpush.msra.mxu0 0.0
    %238 = vmatpush.msra.mxu0 0.0
    %239 = vmatpush.msra.mxu0 0.0
    %240 = vmatpush.msra.mxu0 0.0
    %241 = vmatpush.msra.mxu0 %v221
    %242 = vmatmul.f32.gmra.mxu0 %v224
    %v243 = vpop.f32.mrf.mxu0
    %v244 = vadd.f32 0.0, %v243
    %245 = vdwg.mxu0
    %247 = vrot.lane.b32.xlu0 %v244, 16
    %v248 = vpop.permute.xlu0 %247
    %v250 = vsel %vm116, %v178, %v248
    %252 = vrot.lane.b32.xlu0 %v106, 96
    %v253 = vpop.permute.xlu0 %252
    %v254 = vsel %vm116, %v106, 0
    %v256 = vsel %vm116, %v253, 0
    %258 = vmatpush.xpose.msra.mxu0 0.0
    %259 = vmatpush.xpose.msra.mxu0 0.0
    %260 = vmatpush.xpose.msra.mxu0 0.0
    %261 = vmatpush.xpose.msra.mxu0 0.0
    %262 = vmatpush.xpose.msra.mxu0 0.0
    %263 = vmatpush.xpose.msra.mxu0 0.0
    %264 = vmatpush.xpose.msra.mxu0 0.0
    %265 = vmatpush.xpose.msra.mxu0 0.0
    %266 = vmatpush.xpose.msra.mxu0 0.0
    %267 = vmatpush.xpose.msra.mxu0 0.0
    %268 = vmatpush.xpose.msra.mxu0 0.0
    %269 = vmatpush.xpose.msra.mxu0 0.0
    %270 = vmatpush.xpose.msra.mxu0 0.0
    %271 = vmatpush.xpose.msra.mxu0 0.0
    %272 = vmatpush.xpose.msra.mxu0 0.0
    %273 = vmatpush.xpose.msra.mxu0 %v256
    %274 = vmatmul.f32.gmra.mxu0 %v254
    %v275 = vpop.f32.mrf.mxu0
    %v276 = vadd.f32 0.0, %v275
    %277 = vdwg.mxu0
    %v278 = vsel %vm112, %v276, -inf
    %v279 = vsel %vm142, %v278, -inf
    %280 = vmax.xlane.f32.xlu0 %v279
    %v281 = vpop.xlane.xlu0 %280
    %v282 = vsub.f32 %v278, %v281
    %v283 = vmul.f32 %v282, 1.442695
    %v284 = vpow.pop %v283
    %v285 = vsel %vm142, %v284, 0.0
    %286 = vadd.xlane.f32.xlu0 %v285
    %v287 = vpop.xlane.xlu0 %286
    %v288 = vrcp.pop %v287
    %v289 = vmul.f32 %v284, %v288
    %290 = vrot.lane.b32.xlu0 %v106, 64
    %v291 = vpop.permute.xlu0 %290
    %v294 = vsel %vm142, %v289, 0
    %296 = vmatpush.msra.mxu0 0.0
    %297 = vmatpush.msra.mxu0 0.0
    %298 = vmatpush.msra.mxu0 0.0
    %299 = vmatpush.msra.mxu0 0.0
    %300 = vmatpush.msra.mxu0 0.0
    %301 = vmatpush.msra.mxu0 0.0
    %302 = vmatpush.msra.mxu0 0.0
    %303 = vmatpush.msra.mxu0 0.0
    %304 = vmatpush.msra.mxu0 0.0
    %305 = vmatpush.msra.mxu0 0.0
    %306 = vmatpush.msra.mxu0 0.0
    %307 = vmatpush.msra.mxu0 0.0
    %308 = vmatpush.msra.mxu0 0.0
    %309 = vmatpush.msra.mxu0 0.0
    %310 = vmatpush.msra.mxu0 0.0
    %311 = vmatpush.msra.mxu0 %v291
    %312 = vmatmul.f32.gmra.mxu0 %v294
    %v313 = vpop.f32.mrf.mxu0
    %v314 = vadd.f32 0.0, %v313
    %315 = vdwg.mxu0
    %316 = vrot.lane.b32.xlu0 %v106, 112
    %v317 = vpop.permute.xlu0 %316
    %318 = vrot.lane.b32.xlu0 %v106, 80
    %v319 = vpop.permute.xlu0 %318
    %v320 = vsel %vm116, %v317, 0
    %v322 = vsel %vm116, %v319, 0
    %324 = vmatpush.xpose.msra.mxu0 0.0
    %325 = vmatpush.xpose.msra.mxu0 0.0
    %326 = vmatpush.xpose.msra.mxu0 0.0
    %327 = vmatpush.xpose.msra.mxu0 0.0
    %328 = vmatpush.xpose.msra.mxu0 0.0
    %329 = vmatpush.xpose.msra.mxu0 0.0
    %330 = vmatpush.xpose.msra.mxu0 0.0
    %331 = vmatpush.xpose.msra.mxu0 0.0
    %332 = vmatpush.xpose.msra.mxu0 0.0
    %333 = vmatpush.xpose.msra.mxu0 0.0
    %334 = vmatpush.xpose.msra.mxu0 0.0
    %335 = vmatpush.xpose.msra.mxu0 0.0
    %336 = vmatpush.xpose.msra.mxu0 0.0
    %337 = vmatpush.xpose.msra.mxu0 0.0
    %338 = vmatpush.xpose.msra.mxu0 0.0
    %339 = vmatpush.xpose.msra.mxu0 %v322
    %340 = vmatmul.f32.gmra.mxu0 %v320
    %v341 = vpop.f32.mrf.mxu0
    %v342 = vadd.f32 0.0, %v341
    %343 = vdwg.mxu0
    %v344 = vsel %vm112, %v342, -inf
    %v345 = vsel %vm142, %v344, -inf
    %346 = vmax.xlane.f32.xlu0 %v345
    %v347 = vpop.xlane.xlu0 %346
    %v348 = vsub.f32 %v344, %v347
    %v349 = vmul.f32 %v348, 1.442695
    %v350 = vpow.pop %v349
    %v351 = vsel %vm142, %v350, 0.0
    %352 = vadd.xlane.f32.xlu0 %v351
    %v353 = vpop.xlane.xlu0 %352
    %v354 = vrcp.pop %v353
    %v355 = vmul.f32 %v350, %v354
    %356 = vrot.lane.b32.xlu0 %v106, 48
    %v357 = vpop.permute.xlu0 %356
    %v360 = vsel %vm142, %v355, 0
    %362 = vmatpush.msra.mxu0 0.0
    %363 = vmatpush.msra.mxu0 0.0
    %364 = vmatpush.msra.mxu0 0.0
    %365 = vmatpush.msra.mxu0 0.0
    %366 = vmatpush.msra.mxu0 0.0
    %367 = vmatpush.msra.mxu0 0.0
    %368 = vmatpush.msra.mxu0 0.0
    %369 = vmatpush.msra.mxu0 0.0
    %370 = vmatpush.msra.mxu0 0.0
    %371 = vmatpush.msra.mxu0 0.0
    %372 = vmatpush.msra.mxu0 0.0
    %373 = vmatpush.msra.mxu0 0.0
    %374 = vmatpush.msra.mxu0 0.0
    %375 = vmatpush.msra.mxu0 0.0
    %376 = vmatpush.msra.mxu0 0.0
    %377 = vmatpush.msra.mxu0 %v357
    %378 = vmatmul.f32.gmra.mxu0 %v360
    %v379 = vpop.f32.mrf.mxu0
    %v380 = vadd.f32 0.0, %v379
    %381 = vdwg.mxu0
    %383 = vrot.lane.b32.xlu0 %v380, 16
    %v384 = vpop.permute.xlu0 %383
    %v386 = vsel %vm116, %v314, %v384
    %v387 = vld [vmem:[#allocation7] sm:$0xff]
    %v388 = vld [vmem:[#allocation7 + $0x8] sm:$0xff]
    %v389 = vld [vmem:[#allocation7 + $0x10] sm:$0xff]
    %v390 = vld [vmem:[#allocation7 + $0x18] sm:$0xff]
    %v391 = vld [vmem:[%s4] sm:$0x1]
    %v393 = vperm.slane %v391, 0
    %v396 = vsel %vm78, %v250, 0
    %v399 = vsel %vm78, %v386, 0
    %401 = vmatpush.msra.mxu0 0.0
    %402 = vmatpush.msra.mxu0 0.0
    %403 = vmatpush.msra.mxu0 0.0
    %404 = vmatpush.msra.mxu0 0.0
    %405 = vmatpush.msra.mxu0 0.0
    %406 = vmatpush.msra.mxu0 0.0
    %407 = vmatpush.msra.mxu0 0.0
    %408 = vmatpush.msra.mxu0 0.0
    %409 = vmatpush.msra.mxu0 0.0
    %410 = vmatpush.msra.mxu0 0.0
    %411 = vmatpush.msra.mxu0 0.0
    %412 = vmatpush.msra.mxu0 0.0
    %413 = vmatpush.msra.mxu0 %v390
    %414 = vmatpush.msra.mxu0 %v389
    %415 = vmatpush.msra.mxu0 %v388
    %416 = vmatpush.msra.mxu0 %v387
    %417 = vmatmul.f32.gmra.mxu0 %v396
    %v418 = vpop.f32.mrf.mxu0
    %v419 = vadd.f32 %v393, %v418
    %420 = vmatmul.f32.gmra.mxu0 %v399
    %v421 = vpop.f32.mrf.mxu0
    %v422 = vadd.f32 %v393, %v421
    %423 = vdwg.mxu0
    %424 = vst.msk [vmem:[#allocation8] sm:$0xff] %vm78, %v419
    %425 = vst.msk [vmem:[#allocation8 + $0x8] sm:$0xff] %vm78, %v422
    // Predicated region
    $region34: #{tpu_custom_call.1} parent=1 // pred_check
      _
    $region35: #{tpu_custom_call.1} parent=1 // pred_check_branch
      %427 = sbr.rel (0) target = $region37
    $region36: #{tpu_custom_call.1} parent=1 // pred_region
      %429 = vsyncadd [#allocation4], 0
      %s430 = sshll.u32 [#allocation8], 4
      %s431 = int_to_ptr.vmem [resolvable:$true] %s430
      %s432 = sshll.u32 %s5, 4
      %s433 = int_to_ptr.hbm [resolvable:$true] %s432
      %438 = dma.vmem_to_hbm [thread:$0]  %s431, 256, %s433, [#allocation4], 128, 128, 8
    $region37: #{tpu_custom_call.1} parent=1 // pred_fallthru
      _
    // Predicated region
    $region38: #{tpu_custom_call.1} parent=1 // pred_check
      _
    $region39: #{tpu_custom_call.1} parent=1 // pred_check_branch
      %440 = sbr.rel (0) target = $region41
    $region40: #{tpu_custom_call.1} parent=1 // pred_region
      %442 = dma.done [#allocation4], 256
    $region41: #{tpu_custom_call.1} parent=1 // pred_fallthru
      _
    %443 = vsyncpa [#allocation3], 1
    %444 = vsyncpa [#allocation6], 1
    %445 = vsyncpa [#allocation4], 1

</llo_original>
